<compile_context>
chip_gen: v7x
topology: tpu7x:2x2x1
jax: 0.10.0
libtpu: 0.0.40
codegen_flags: <defaults>
</compile_context>

<pallas_src>
import functools

import jax
import jax.numpy as jnp
from jax.experimental import pallas as pl
from jax.experimental.pallas import tpu as pltpu


def _round_up(n, m):
    return (n + m - 1) // m * m


def _choose_tb(batch, tb_max=1024):
    # Largest tile that (a) caps at tb_max, (b) gives >= 2 grid steps when the
    # batch permits (so v7x can shard batch blocks across both TensorCores),
    # and (c) hugs the batch so the last block wastes at most 7 padded rows.
    if batch <= 8:
        return 8
    n_steps = max(pl.cdiv(batch, tb_max), 2)
    return _round_up(pl.cdiv(batch, n_steps), 8)


def _relu(x):
    return jnp.maximum(x, 0.0)


def cvae_gm_kernel(
    # per-batch-block inputs
    x_ref, eps_ref,
    # weights/biases (constant index_map -> DMA'd once, VMEM-resident)
    ew1, eb1, ew2, eb2, ewh, ebh,        # encoder: fc1, fc2, fused (mu|logvar) head
    zw, zb,                              # fused dec_fc1 | proj_fc1 (both consume z)
    dw2, db2, dw3, db3,                  # decoder fc2, fc3
    pw2, pb2,                            # projection fc2
    # outputs (written directly; no slab packing / wrapper re-slicing)
    recon_ref, mu_ref, logvar_ref, z_ref, zproj_ref,
    *, latent_dim, compute_dtype,
):
    L = latent_dim

    def lin(h, w_ref, b_ref):
        # bf16 (or f32) MXU operands, f32 accumulation, f32 bias add
        return jnp.dot(h.astype(compute_dtype), w_ref[...],
                       preferred_element_type=jnp.float32) + b_ref[...]

    x = x_ref[...]

    # ---- Encoder ----
    h = _relu(lin(x, ew1, eb1))            # [TB, 256]
    h = _relu(lin(h, ew2, eb2))            # [TB, 128]
    ml = lin(h, ewh, ebh)                  # [TB, 2L] = mu | logvar (fused heads)
    mu = ml[:, :L]
    logvar = ml[:, L:]

    # ---- Reparameterize (elementwise tail stays f32) ----
    z = mu + eps_ref[...] * jnp.exp(0.5 * logvar)   # [TB, L]

    # ---- Fused dec_fc1 | proj_fc1 (both ReLU'd, both consume z) ----
    zc = _relu(lin(z, zw, zb))             # [TB, 256] = dec_hidden(128) | proj_hidden(128)
    d = zc[:, :128]
    p = zc[:, 128:]

    # ---- Decoder tail ----
    d = _relu(lin(d, dw2, db2))            # [TB, 256]
    recon = lin(d, dw3, db3)               # [TB, input_dim]

    # ---- Projection head + F.normalize(dim=1) ----
    q = lin(p, pw2, pb2)                   # [TB, 64]
    sumsq = jnp.sum(q * q, axis=1, keepdims=True)
    # torch F.normalize: x / max(||x||, 1e-12)  ==  x * rsqrt(max(||x||^2, 1e-24))
    zproj = q * jax.lax.rsqrt(jnp.maximum(sumsq, 1e-24))

    # ---- Direct stores of the module's five outputs ----
    recon_ref[...] = recon
    mu_ref[...] = mu
    logvar_ref[...] = logvar
    z_ref[...] = z
    zproj_ref[...] = zproj


def init_params(key, input_dim, latent_dim=64, num_components=5):
    """Deterministic init mimicking nn.Linear default U(-1/sqrt(fan_in), ...)."""
    def linear(k, fan_in, fan_out):
        k1, k2 = jax.random.split(k)
        bound = 1.0 / jnp.sqrt(fan_in)
        # stored already transposed: (in, out); bias as (1, out)
        w = jax.random.uniform(k1, (fan_in, fan_out), jnp.float32, -bound, bound)
        b = jax.random.uniform(k2, (1, fan_out), jnp.float32, -bound, bound)
        return w, b

    keys = jax.random.split(key, 11)
    params = {}
    params["enc_fc1"] = linear(keys[0], input_dim, 256)
    params["enc_fc2"] = linear(keys[1], 256, 128)
    params["enc_mean"] = linear(keys[2], 128, latent_dim)
    params["enc_logvar"] = linear(keys[3], 128, latent_dim)
    params["dec_fc1"] = linear(keys[4], latent_dim, 128)
    params["dec_fc2"] = linear(keys[5], 128, 256)
    params["dec_fc3"] = linear(keys[6], 256, input_dim)
    params["proj_fc1"] = linear(keys[7], latent_dim, 128)
    params["proj_fc2"] = linear(keys[8], 128, 64)
    # gmm params exist in the module but are unused in forward()
    params["gmm_means"] = jax.random.normal(keys[9], (num_components, latent_dim), jnp.float32)
    params["gmm_logvars"] = jax.random.normal(keys[10], (num_components, latent_dim), jnp.float32)
    return params


@functools.partial(jax.jit, static_argnames=("input_dim", "latent_dim", "use_bf16"))
def cvae_gm_forward(x, eps, params, *, input_dim, latent_dim, use_bf16=False):
    B = x.shape[0]
    L = latent_dim
    compute_dtype = jnp.bfloat16 if use_bf16 else jnp.float32

    # --- weight packing (wrapper-side, jitted away) ---
    # fused encoder heads: mu | logvar
    ewm, ebm = params["enc_mean"]
    ewl, ebl = params["enc_logvar"]
    ewh = jnp.concatenate([ewm, ewl], axis=1)          # [128, 2L]
    ebh = jnp.concatenate([ebm, ebl], axis=1)          # [1, 2L]

    # fused z-consumers: dec_fc1 | proj_fc1
    dw1, db1 = params["dec_fc1"]
    pw1, pb1 = params["proj_fc1"]
    zw = jnp.concatenate([dw1, pw1], axis=1)           # [L, 256]
    zb = jnp.concatenate([db1, pb1], axis=1)           # [1, 256]

    def wcast(w):
        # matmul operands (weights) optionally in bf16; biases stay f32
        return w.astype(compute_dtype)

    weights = [
        wcast(params["enc_fc1"][0]), params["enc_fc1"][1],
        wcast(params["enc_fc2"][0]), params["enc_fc2"][1],
        wcast(ewh), ebh,
        wcast(zw), zb,
        wcast(params["dec_fc2"][0]), params["dec_fc2"][1],
        wcast(params["dec_fc3"][0]), params["dec_fc3"][1],
        wcast(params["proj_fc2"][0]), params["proj_fc2"][1],
    ]

    # --- batch tiling (big tiles, >=2 steps when possible, minimal padding) ---
    TB = _choose_tb(B)
    B_pad = _round_up(B, TB)
    if B_pad != B:
        x = jnp.pad(x, ((0, B_pad - B), (0, 0)))
        eps = jnp.pad(eps, ((0, B_pad - B), (0, 0)))
    grid = (B_pad // TB,)

    def batch_spec(width):
        return pl.BlockSpec((TB, width), lambda i: (i, 0))

    def const_spec(arr):
        # full-array block, constant index -> fetched once, VMEM-resident
        return pl.BlockSpec(arr.shape, lambda i: (0, 0))

    in_specs = [batch_spec(input_dim), batch_spec(L)] + [const_spec(w) for w in weights]
    out_specs = (
        batch_spec(input_dim),   # x_recon
        batch_spec(L),           # mu
        batch_spec(L),           # logvar
        batch_spec(L),           # z
        batch_spec(64),          # z_proj
    )
    out_shape = (
        jax.ShapeDtypeStruct((B_pad, input_dim), jnp.float32),
        jax.ShapeDtypeStruct((B_pad, L), jnp.float32),
        jax.ShapeDtypeStruct((B_pad, L), jnp.float32),
        jax.ShapeDtypeStruct((B_pad, L), jnp.float32),
        jax.ShapeDtypeStruct((B_pad, 64), jnp.float32),
    )

    # --- advisory cost estimate so XLA schedules surrounding ops sensibly ---
    layer_dims = [(input_dim, 256), (256, 128), (128, 2 * L), (L, 256),
                  (128, 256), (256, input_dim), (128, 64)]
    wb = 2 if use_bf16 else 4
    weight_bytes = sum(a * b for a, b in layer_dims) * wb + sum(b for _, b in layer_dims) * 4
    cost = pl.CostEstimate(
        flops=2 * B_pad * sum(a * b for a, b in layer_dims),
        transcendentals=B_pad * (L + 1),                       # exp per latent + rsqrt per row
        bytes_accessed=4 * B_pad * (input_dim + L)             # x, eps in
                       + 4 * B_pad * (input_dim + 3 * L + 64)  # five outputs
                       + weight_bytes,
    )

    x_recon, mu, logvar, z, z_proj = pl.pallas_call(
        functools.partial(cvae_gm_kernel, latent_dim=L, compute_dtype=compute_dtype),
        grid=grid,
        in_specs=in_specs,
        out_specs=out_specs,
        out_shape=out_shape,
        cost_estimate=cost,
        compiler_params=pltpu.CompilerParams(
            dimension_semantics=("parallel",),       # shard batch blocks across TCs on v7x
            vmem_limit_bytes=32 * 1024 * 1024,       # keep large TB portable to v5e's 16 MiB default
        ),
    )(x, eps, *weights)

    if B_pad != B:
        x_recon, mu, logvar, z, z_proj = (a[:B] for a in (x_recon, mu, logvar, z, z_proj))
    return x_recon, mu, logvar, z, z_proj


def ref_forward(x, eps, p):
    """Pure-JAX reference matching the PyTorch module's forward()."""
    def lin(h, wb):
        w, b = wb
        return h @ w + b
    h = jax.nn.relu(lin(x, p["enc_fc1"]))
    h = jax.nn.relu(lin(h, p["enc_fc2"]))
    mu_r = lin(h, p["enc_mean"])
    lv_r = lin(h, p["enc_logvar"])
    z_r = mu_r + eps * jnp.exp(0.5 * lv_r)
    d = jax.nn.relu(lin(z_r, p["dec_fc1"]))
    d = jax.nn.relu(lin(d, p["dec_fc2"]))
    recon_r = lin(d, p["dec_fc3"])
    q = jax.nn.relu(lin(z_r, p["proj_fc1"]))
    q = lin(q, p["proj_fc2"])
    zp_r = q / jnp.maximum(jnp.linalg.norm(q, axis=1, keepdims=True), 1e-12)
    return recon_r, mu_r, lv_r, z_r, zp_r


if __name__ == "__main__":
    B = 8
    INPUT_DIM = 32
    LATENT_DIM = 64

    key = jax.random.PRNGKey(0)
    k_params, k_x, k_eps = jax.random.split(key, 3)

    params = init_params(k_params, INPUT_DIM, LATENT_DIM)
    x = jax.random.normal(k_x, (B, INPUT_DIM), jnp.float32)
    # eps of reparameterize generated deterministically outside the kernel
    # TODO(synk): could use pltpu.prng_seed + pltpu.stateful_normal in-kernel, but that
    # changes the RNG stream vs. the reference, so eps stays an explicit input.
    eps = jax.random.normal(k_eps, (B, LATENT_DIM), jnp.float32)

    # f32 path (bit-faithful to the module up to EUP rsqrt approximation)
    outs = cvae_gm_forward(x, eps, params, input_dim=INPUT_DIM, latent_dim=LATENT_DIM)
    jax.block_until_ready(outs)

    refs = ref_forward(x, eps, params)
    for got, want in zip(outs, refs):
        assert got.shape == want.shape
        assert jnp.allclose(got, want, atol=1e-4, rtol=1e-4)

    # bf16 MXU-operand / f32-accumulate path (v6e/v7x optimization), looser tolerance
    outs_bf16 = cvae_gm_forward(
        x, eps, params, input_dim=INPUT_DIM, latent_dim=LATENT_DIM, use_bf16=True
    )
    jax.block_until_ready(outs_bf16)
    for got, want in zip(outs_bf16, refs):
        assert got.shape == want.shape
        assert jnp.allclose(got, want, atol=5e-2, rtol=5e-2)

    # TODO(synk): gmm_kl_divergence uses gmm_means/gmm_logvars but is not part of forward(); not kernelized.
    print("KERNEL_OK")
</pallas_src>

<mosaic_0001>
module attributes {stable_mosaic.version = 11 : i64} {
  func.func @cvae_gm_kernel(%arg0: i32, %arg1: memref<8x32xf32, #tpu.memory_space<vmem>>, %arg2: memref<8x64xf32, #tpu.memory_space<vmem>>, %arg3: memref<32x256xf32, #tpu.memory_space<vmem>>, %arg4: memref<1x256xf32, #tpu.memory_space<vmem>>, %arg5: memref<256x128xf32, #tpu.memory_space<vmem>>, %arg6: memref<1x128xf32, #tpu.memory_space<vmem>>, %arg7: memref<128x128xf32, #tpu.memory_space<vmem>>, %arg8: memref<1x128xf32, #tpu.memory_space<vmem>>, %arg9: memref<64x256xf32, #tpu.memory_space<vmem>>, %arg10: memref<1x256xf32, #tpu.memory_space<vmem>>, %arg11: memref<128x256xf32, #tpu.memory_space<vmem>>, %arg12: memref<1x256xf32, #tpu.memory_space<vmem>>, %arg13: memref<256x32xf32, #tpu.memory_space<vmem>>, %arg14: memref<1x32xf32, #tpu.memory_space<vmem>>, %arg15: memref<128x64xf32, #tpu.memory_space<vmem>>, %arg16: memref<1x64xf32, #tpu.memory_space<vmem>>, %arg17: memref<8x32xf32, #tpu.memory_space<vmem>>, %arg18: memref<8x64xf32, #tpu.memory_space<vmem>>, %arg19: memref<8x64xf32, #tpu.memory_space<vmem>>, %arg20: memref<8x64xf32, #tpu.memory_space<vmem>>, %arg21: memref<8x64xf32, #tpu.memory_space<vmem>>) attributes {dimension_semantics = [#tpu.dimension_semantics<parallel>], iteration_bounds = array<i64: 1>, scalar_prefetch = 0 : i64, scratch_operands = 0 : i64, tpu.core_type = #tpu.core_type<tc>, window_params = [{transform_indices = @transform_0, window_bounds = array<i64: 8, 32>}, {transform_indices = @transform_1, window_bounds = array<i64: 8, 64>}, {pipeline_mode = #tpu.pipeline_mode<synchronous>, transform_indices = @transform_2, window_bounds = array<i64: 32, 256>}, {pipeline_mode = #tpu.pipeline_mode<synchronous>, transform_indices = @transform_3, window_bounds = array<i64: 1, 256>}, {pipeline_mode = #tpu.pipeline_mode<synchronous>, transform_indices = @transform_4, window_bounds = array<i64: 256, 128>}, {pipeline_mode = #tpu.pipeline_mode<synchronous>, transform_indices = @transform_5, window_bounds = array<i64: 1, 128>}, {pipeline_mode = #tpu.pipeline_mode<synchronous>, transform_indices = @transform_6, window_bounds = array<i64: 128, 128>}, {pipeline_mode = #tpu.pipeline_mode<synchronous>, transform_indices = @transform_7, window_bounds = array<i64: 1, 128>}, {pipeline_mode = #tpu.pipeline_mode<synchronous>, transform_indices = @transform_8, window_bounds = array<i64: 64, 256>}, {pipeline_mode = #tpu.pipeline_mode<synchronous>, transform_indices = @transform_9, window_bounds = array<i64: 1, 256>}, {pipeline_mode = #tpu.pipeline_mode<synchronous>, transform_indices = @transform_10, window_bounds = array<i64: 128, 256>}, {pipeline_mode = #tpu.pipeline_mode<synchronous>, transform_indices = @transform_11, window_bounds = array<i64: 1, 256>}, {pipeline_mode = #tpu.pipeline_mode<synchronous>, transform_indices = @transform_12, window_bounds = array<i64: 256, 32>}, {pipeline_mode = #tpu.pipeline_mode<synchronous>, transform_indices = @transform_13, window_bounds = array<i64: 1, 32>}, {pipeline_mode = #tpu.pipeline_mode<synchronous>, transform_indices = @transform_14, window_bounds = array<i64: 128, 64>}, {pipeline_mode = #tpu.pipeline_mode<synchronous>, transform_indices = @transform_15, window_bounds = array<i64: 1, 64>}, {transform_indices = @transform_16, window_bounds = array<i64: 8, 32>}, {transform_indices = @transform_17, window_bounds = array<i64: 8, 64>}, {transform_indices = @transform_18, window_bounds = array<i64: 8, 64>}, {transform_indices = @transform_19, window_bounds = array<i64: 8, 64>}, {transform_indices = @transform_20, window_bounds = array<i64: 8, 64>}]} {
    %c0 = arith.constant 0 : index
    %c0_0 = arith.constant 0 : index
    %0 = vector.load %arg1[%c0, %c0_0] : memref<8x32xf32, #tpu.memory_space<vmem>>, vector<8x32xf32>
    %c0_1 = arith.constant 0 : index
    %c0_2 = arith.constant 0 : index
    %1 = vector.load %arg3[%c0_1, %c0_2] : memref<32x256xf32, #tpu.memory_space<vmem>>, vector<32x256xf32>
    %cst = arith.constant dense<0.000000e+00> : vector<8x256xf32>
    %2 = tpu.matmul %0, %1, %cst {dimension_numbers = #tpu.dot_dimension_numbers<[1], [0], [0], [1], [0, 0, 1, 1], [], []>} : vector<8x32xf32>, vector<32x256xf32>, vector<8x256xf32> -> vector<8x256xf32>
    %c0_3 = arith.constant 0 : index
    %c0_4 = arith.constant 0 : index
    %3 = vector.load %arg4[%c0_3, %c0_4] : memref<1x256xf32, #tpu.memory_space<vmem>>, vector<1x256xf32>
    %4 = vector.broadcast %3 : vector<1x256xf32> to vector<8x256xf32>
    %5 = arith.addf %2, %4 : vector<8x256xf32>
    %cst_5 = arith.constant 0.000000e+00 : f32
    %6 = vector.broadcast %cst_5 : f32 to vector<8x256xf32>
    %7 = arith.maximumf %5, %6 : vector<8x256xf32>
    %c0_6 = arith.constant 0 : index
    %c0_7 = arith.constant 0 : index
    %8 = vector.load %arg5[%c0_6, %c0_7] : memref<256x128xf32, #tpu.memory_space<vmem>>, vector<256x128xf32>
    %cst_8 = arith.constant dense<0.000000e+00> : vector<8x128xf32>
    %9 = tpu.matmul %7, %8, %cst_8 {dimension_numbers = #tpu.dot_dimension_numbers<[1], [0], [0], [1], [0, 0, 1, 1], [], []>} : vector<8x256xf32>, vector<256x128xf32>, vector<8x128xf32> -> vector<8x128xf32>
    %c0_9 = arith.constant 0 : index
    %c0_10 = arith.constant 0 : index
    %10 = vector.load %arg6[%c0_9, %c0_10] : memref<1x128xf32, #tpu.memory_space<vmem>>, vector<1x128xf32>
    %11 = vector.broadcast %10 : vector<1x128xf32> to vector<8x128xf32>
    %12 = arith.addf %9, %11 : vector<8x128xf32>
    %cst_11 = arith.constant 0.000000e+00 : f32
    %13 = vector.broadcast %cst_11 : f32 to vector<8x128xf32>
    %14 = arith.maximumf %12, %13 : vector<8x128xf32>
    %c0_12 = arith.constant 0 : index
    %c0_13 = arith.constant 0 : index
    %15 = vector.load %arg7[%c0_12, %c0_13] : memref<128x128xf32, #tpu.memory_space<vmem>>, vector<128x128xf32>
    %cst_14 = arith.constant dense<0.000000e+00> : vector<8x128xf32>
    %16 = tpu.matmul %14, %15, %cst_14 {dimension_numbers = #tpu.dot_dimension_numbers<[1], [0], [0], [1], [0, 0, 1, 1], [], []>} : vector<8x128xf32>, vector<128x128xf32>, vector<8x128xf32> -> vector<8x128xf32>
    %c0_15 = arith.constant 0 : index
    %c0_16 = arith.constant 0 : index
    %17 = vector.load %arg8[%c0_15, %c0_16] : memref<1x128xf32, #tpu.memory_space<vmem>>, vector<1x128xf32>
    %18 = vector.broadcast %17 : vector<1x128xf32> to vector<8x128xf32>
    %19 = arith.addf %16, %18 : vector<8x128xf32>
    %20 = vector.extract_strided_slice %19 {offsets = [0, 0], sizes = [8, 64], strides = [1, 1]} : vector<8x128xf32> to vector<8x64xf32>
    %21 = vector.extract_strided_slice %19 {offsets = [0, 64], sizes = [8, 64], strides = [1, 1]} : vector<8x128xf32> to vector<8x64xf32>
    %c0_17 = arith.constant 0 : index
    %c0_18 = arith.constant 0 : index
    %22 = vector.load %arg2[%c0_17, %c0_18] : memref<8x64xf32, #tpu.memory_space<vmem>>, vector<8x64xf32>
    %cst_19 = arith.constant 5.000000e-01 : f32
    %23 = vector.broadcast %cst_19 : f32 to vector<8x64xf32>
    %24 = arith.mulf %23, %21 : vector<8x64xf32>
    %25 = math.exp %24 : vector<8x64xf32>
    %26 = arith.mulf %22, %25 : vector<8x64xf32>
    %27 = arith.addf %20, %26 : vector<8x64xf32>
    %c0_20 = arith.constant 0 : index
    %c0_21 = arith.constant 0 : index
    %28 = vector.load %arg9[%c0_20, %c0_21] : memref<64x256xf32, #tpu.memory_space<vmem>>, vector<64x256xf32>
    %cst_22 = arith.constant dense<0.000000e+00> : vector<8x256xf32>
    %29 = tpu.matmul %27, %28, %cst_22 {dimension_numbers = #tpu.dot_dimension_numbers<[1], [0], [0], [1], [0, 0, 1, 1], [], []>} : vector<8x64xf32>, vector<64x256xf32>, vector<8x256xf32> -> vector<8x256xf32>
    %c0_23 = arith.constant 0 : index
    %c0_24 = arith.constant 0 : index
    %30 = vector.load %arg10[%c0_23, %c0_24] : memref<1x256xf32, #tpu.memory_space<vmem>>, vector<1x256xf32>
    %31 = vector.broadcast %30 : vector<1x256xf32> to vector<8x256xf32>
    %32 = arith.addf %29, %31 : vector<8x256xf32>
    %cst_25 = arith.constant 0.000000e+00 : f32
    %33 = vector.broadcast %cst_25 : f32 to vector<8x256xf32>
    %34 = arith.maximumf %32, %33 : vector<8x256xf32>
    %35 = vector.extract_strided_slice %34 {offsets = [0, 0], sizes = [8, 128], strides = [1, 1]} : vector<8x256xf32> to vector<8x128xf32>
    %36 = vector.extract_strided_slice %34 {offsets = [0, 128], sizes = [8, 128], strides = [1, 1]} : vector<8x256xf32> to vector<8x128xf32>
    %c0_26 = arith.constant 0 : index
    %c0_27 = arith.constant 0 : index
    %37 = vector.load %arg11[%c0_26, %c0_27] : memref<128x256xf32, #tpu.memory_space<vmem>>, vector<128x256xf32>
    %cst_28 = arith.constant dense<0.000000e+00> : vector<8x256xf32>
    %38 = tpu.matmul %35, %37, %cst_28 {dimension_numbers = #tpu.dot_dimension_numbers<[1], [0], [0], [1], [0, 0, 1, 1], [], []>} : vector<8x128xf32>, vector<128x256xf32>, vector<8x256xf32> -> vector<8x256xf32>
    %c0_29 = arith.constant 0 : index
    %c0_30 = arith.constant 0 : index
    %39 = vector.load %arg12[%c0_29, %c0_30] : memref<1x256xf32, #tpu.memory_space<vmem>>, vector<1x256xf32>
    %40 = vector.broadcast %39 : vector<1x256xf32> to vector<8x256xf32>
    %41 = arith.addf %38, %40 : vector<8x256xf32>
    %cst_31 = arith.constant 0.000000e+00 : f32
    %42 = vector.broadcast %cst_31 : f32 to vector<8x256xf32>
    %43 = arith.maximumf %41, %42 : vector<8x256xf32>
    %c0_32 = arith.constant 0 : index
    %c0_33 = arith.constant 0 : index
    %44 = vector.load %arg13[%c0_32, %c0_33] : memref<256x32xf32, #tpu.memory_space<vmem>>, vector<256x32xf32>
    %cst_34 = arith.constant dense<0.000000e+00> : vector<8x32xf32>
    %45 = tpu.matmul %43, %44, %cst_34 {dimension_numbers = #tpu.dot_dimension_numbers<[1], [0], [0], [1], [0, 0, 1, 1], [], []>} : vector<8x256xf32>, vector<256x32xf32>, vector<8x32xf32> -> vector<8x32xf32>
    %c0_35 = arith.constant 0 : index
    %c0_36 = arith.constant 0 : index
    %46 = vector.load %arg14[%c0_35, %c0_36] : memref<1x32xf32, #tpu.memory_space<vmem>>, vector<1x32xf32>
    %47 = vector.broadcast %46 : vector<1x32xf32> to vector<8x32xf32>
    %48 = arith.addf %45, %47 : vector<8x32xf32>
    %c0_37 = arith.constant 0 : index
    %c0_38 = arith.constant 0 : index
    %49 = vector.load %arg15[%c0_37, %c0_38] : memref<128x64xf32, #tpu.memory_space<vmem>>, vector<128x64xf32>
    %cst_39 = arith.constant dense<0.000000e+00> : vector<8x64xf32>
    %50 = tpu.matmul %36, %49, %cst_39 {dimension_numbers = #tpu.dot_dimension_numbers<[1], [0], [0], [1], [0, 0, 1, 1], [], []>} : vector<8x128xf32>, vector<128x64xf32>, vector<8x64xf32> -> vector<8x64xf32>
    %c0_40 = arith.constant 0 : index
    %c0_41 = arith.constant 0 : index
    %51 = vector.load %arg16[%c0_40, %c0_41] : memref<1x64xf32, #tpu.memory_space<vmem>>, vector<1x64xf32>
    %52 = vector.broadcast %51 : vector<1x64xf32> to vector<8x64xf32>
    %53 = arith.addf %50, %52 : vector<8x64xf32>
    %54 = arith.mulf %53, %53 : vector<8x64xf32>
    %cst_42 = arith.constant dense<0.000000e+00> : vector<8xf32>
    %55 = vector.multi_reduction <add>, %54, %cst_42 [1] : vector<8x64xf32> to vector<8xf32>
    %56 = vector.shape_cast %55 : vector<8xf32> to vector<8x1xf32>
    %cst_43 = arith.constant 1.000000e-24 : f32
    %57 = vector.broadcast %cst_43 : f32 to vector<8x1xf32>
    %58 = arith.maximumf %56, %57 : vector<8x1xf32>
    %59 = math.rsqrt %58 : vector<8x1xf32>
    %60 = vector.broadcast %59 : vector<8x1xf32> to vector<8x64xf32>
    %61 = arith.mulf %53, %60 : vector<8x64xf32>
    %c0_44 = arith.constant 0 : index
    %c0_45 = arith.constant 0 : index
    %62 = vector.load %arg17[%c0_44, %c0_45] : memref<8x32xf32, #tpu.memory_space<vmem>>, vector<8x32xf32>
    tpu.vector_store %arg17[%c0_44, %c0_45], %48 {strides = array<i32>} : memref<8x32xf32, #tpu.memory_space<vmem>>, vector<8x32xf32>,
    %c0_46 = arith.constant 0 : index
    %c0_47 = arith.constant 0 : index
    %63 = vector.load %arg18[%c0_46, %c0_47] : memref<8x64xf32, #tpu.memory_space<vmem>>, vector<8x64xf32>
    tpu.vector_store %arg18[%c0_46, %c0_47], %20 {strides = array<i32>} : memref<8x64xf32, #tpu.memory_space<vmem>>, vector<8x64xf32>,
    %c0_48 = arith.constant 0 : index
    %c0_49 = arith.constant 0 : index
    %64 = vector.load %arg19[%c0_48, %c0_49] : memref<8x64xf32, #tpu.memory_space<vmem>>, vector<8x64xf32>
    tpu.vector_store %arg19[%c0_48, %c0_49], %21 {strides = array<i32>} : memref<8x64xf32, #tpu.memory_space<vmem>>, vector<8x64xf32>,
    %c0_50 = arith.constant 0 : index
    %c0_51 = arith.constant 0 : index
    %65 = vector.load %arg20[%c0_50, %c0_51] : memref<8x64xf32, #tpu.memory_space<vmem>>, vector<8x64xf32>
    tpu.vector_store %arg20[%c0_50, %c0_51], %27 {strides = array<i32>} : memref<8x64xf32, #tpu.memory_space<vmem>>, vector<8x64xf32>,
    %c0_52 = arith.constant 0 : index
    %c0_53 = arith.constant 0 : index
    %66 = vector.load %arg21[%c0_52, %c0_53] : memref<8x64xf32, #tpu.memory_space<vmem>>, vector<8x64xf32>
    tpu.vector_store %arg21[%c0_52, %c0_53], %61 {strides = array<i32>} : memref<8x64xf32, #tpu.memory_space<vmem>>, vector<8x64xf32>,
    return
  }
  func.func @transform_0(%arg0: i32) -> (i32, i32) {
    %c0_i32 = arith.constant 0 : i32
    %c0_i32_0 = arith.constant 0 : i32
    return %arg0, %c0_i32 : i32, i32
  }
  func.func @transform_1(%arg0: i32) -> (i32, i32) {
    %c0_i32 = arith.constant 0 : i32
    %c0_i32_0 = arith.constant 0 : i32
    return %arg0, %c0_i32 : i32, i32
  }
  func.func @transform_2(%arg0: i32) -> (i32, i32) {
    %c0_i32 = arith.constant 0 : i32
    %c0_i32_0 = arith.constant 0 : i32
    %c0_i32_1 = arith.constant 0 : i32
    return %c0_i32, %c0_i32_0 : i32, i32
  }
  func.func @transform_3(%arg0: i32) -> (i32, i32) {
    %c0_i32 = arith.constant 0 : i32
    %c0_i32_0 = arith.constant 0 : i32
    %c0_i32_1 = arith.constant 0 : i32
    return %c0_i32, %c0_i32_0 : i32, i32
  }
  func.func @transform_4(%arg0: i32) -> (i32, i32) {
    %c0_i32 = arith.constant 0 : i32
    %c0_i32_0 = arith.constant 0 : i32
    %c0_i32_1 = arith.constant 0 : i32
    return %c0_i32, %c0_i32_0 : i32, i32
  }
  func.func @transform_5(%arg0: i32) -> (i32, i32) {
    %c0_i32 = arith.constant 0 : i32
    %c0_i32_0 = arith.constant 0 : i32
    %c0_i32_1 = arith.constant 0 : i32
    return %c0_i32, %c0_i32_0 : i32, i32
  }
  func.func @transform_6(%arg0: i32) -> (i32, i32) {
    %c0_i32 = arith.constant 0 : i32
    %c0_i32_0 = arith.constant 0 : i32
    %c0_i32_1 = arith.constant 0 : i32
    return %c0_i32, %c0_i32_0 : i32, i32
  }
  func.func @transform_7(%arg0: i32) -> (i32, i32) {
    %c0_i32 = arith.constant 0 : i32
    %c0_i32_0 = arith.constant 0 : i32
    %c0_i32_1 = arith.constant 0 : i32
    return %c0_i32, %c0_i32_0 : i32, i32
  }
  func.func @transform_8(%arg0: i32) -> (i32, i32) {
    %c0_i32 = arith.constant 0 : i32
    %c0_i32_0 = arith.constant 0 : i32
    %c0_i32_1 = arith.constant 0 : i32
    return %c0_i32, %c0_i32_0 : i32, i32
  }
  func.func @transform_9(%arg0: i32) -> (i32, i32) {
    %c0_i32 = arith.constant 0 : i32
    %c0_i32_0 = arith.constant 0 : i32
    %c0_i32_1 = arith.constant 0 : i32
    return %c0_i32, %c0_i32_0 : i32, i32
  }
  func.func @transform_10(%arg0: i32) -> (i32, i32) {
    %c0_i32 = arith.constant 0 : i32
    %c0_i32_0 = arith.constant 0 : i32
    %c0_i32_1 = arith.constant 0 : i32
    return %c0_i32, %c0_i32_0 : i32, i32
  }
  func.func @transform_11(%arg0: i32) -> (i32, i32) {
    %c0_i32 = arith.constant 0 : i32
    %c0_i32_0 = arith.constant 0 : i32
    %c0_i32_1 = arith.constant 0 : i32
    return %c0_i32, %c0_i32_0 : i32, i32
  }
  func.func @transform_12(%arg0: i32) -> (i32, i32) {
    %c0_i32 = arith.constant 0 : i32
    %c0_i32_0 = arith.constant 0 : i32
    %c0_i32_1 = arith.constant 0 : i32
    return %c0_i32, %c0_i32_0 : i32, i32
  }
  func.func @transform_13(%arg0: i32) -> (i32, i32) {
    %c0_i32 = arith.constant 0 : i32
    %c0_i32_0 = arith.constant 0 : i32
    %c0_i32_1 = arith.constant 0 : i32
    return %c0_i32, %c0_i32_0 : i32, i32
  }
  func.func @transform_14(%arg0: i32) -> (i32, i32) {
    %c0_i32 = arith.constant 0 : i32
    %c0_i32_0 = arith.constant 0 : i32
    %c0_i32_1 = arith.constant 0 : i32
    return %c0_i32, %c0_i32_0 : i32, i32
  }
  func.func @transform_15(%arg0: i32) -> (i32, i32) {
    %c0_i32 = arith.constant 0 : i32
    %c0_i32_0 = arith.constant 0 : i32
    %c0_i32_1 = arith.constant 0 : i32
    return %c0_i32, %c0_i32_0 : i32, i32
  }
  func.func @transform_16(%arg0: i32) -> (i32, i32) {
    %c0_i32 = arith.constant 0 : i32
    %c0_i32_0 = arith.constant 0 : i32
    return %arg0, %c0_i32 : i32, i32
  }
  func.func @transform_17(%arg0: i32) -> (i32, i32) {
    %c0_i32 = arith.constant 0 : i32
    %c0_i32_0 = arith.constant 0 : i32
    return %arg0, %c0_i32 : i32, i32
  }
  func.func @transform_18(%arg0: i32) -> (i32, i32) {
    %c0_i32 = arith.constant 0 : i32
    %c0_i32_0 = arith.constant 0 : i32
    return %arg0, %c0_i32 : i32, i32
  }
  func.func @transform_19(%arg0: i32) -> (i32, i32) {
    %c0_i32 = arith.constant 0 : i32
    %c0_i32_0 = arith.constant 0 : i32
    return %arg0, %c0_i32 : i32, i32
  }
  func.func @transform_20(%arg0: i32) -> (i32, i32) {
    %c0_i32 = arith.constant 0 : i32
    %c0_i32_0 = arith.constant 0 : i32
    return %arg0, %c0_i32 : i32, i32
  }
}

</mosaic_0001>

<llo_original>
// kernel: cvae_gm_forward.1
$region0: #{cvae_gm_forward.1}
  #allocation0 [shape = 'u32[]', space=smem, size = 0x4, offset = 0x4, fixed_abs, tag = 'smem constant byte address 0x4 - core index']
  #allocation1 [shape = 'u32[144,128]{1,0:T(1,128)}', space=vmem, size = 0x12000, scoped, tag = 'internal scratch']
  %s0 = inlined_call_operand.vmem [shape: f32[8,32], index: 0, kind: input, shape index: {}]
  %s1 = inlined_call_operand.vmem [shape: f32[8,64], index: 1, kind: input, shape index: {}]
  %s2 = inlined_call_operand.vmem [shape: f32[32,256], index: 2, kind: input, shape index: {}]
  %s3 = inlined_call_operand.vmem [shape: f32[1,256], index: 3, kind: input, shape index: {}]
  %s4 = inlined_call_operand.vmem [shape: f32[256,128], index: 4, kind: input, shape index: {}]
  %s5 = inlined_call_operand.vmem [shape: f32[1,128], index: 5, kind: input, shape index: {}]
  %s6 = inlined_call_operand.vmem [shape: f32[128,128], index: 6, kind: input, shape index: {}]
  %s7 = inlined_call_operand.vmem [shape: f32[1,128], index: 7, kind: input, shape index: {}]
  %s8 = inlined_call_operand.vmem [shape: f32[64,256], index: 8, kind: input, shape index: {}]
  %s9 = inlined_call_operand.vmem [shape: f32[1,256], index: 9, kind: input, shape index: {}]
  %s10 = inlined_call_operand.vmem [shape: f32[128,256], index: 10, kind: input, shape index: {}]
  %s11 = inlined_call_operand.vmem [shape: f32[1,256], index: 11, kind: input, shape index: {}]
  %s12 = inlined_call_operand.vmem [shape: f32[256,32], index: 12, kind: input, shape index: {}]
  %s13 = inlined_call_operand.vmem [shape: f32[1,32], index: 13, kind: input, shape index: {}]
  %s14 = inlined_call_operand.vmem [shape: f32[128,64], index: 14, kind: input, shape index: {}]
  %s15 = inlined_call_operand.vmem [shape: f32[1,64], index: 15, kind: input, shape index: {}]
  %s16 = inlined_call_operand.hbm [shape: f32[8,32], index: 16, kind: output, shape index: {0}]
  %s17 = inlined_call_operand.hbm [shape: f32[8,64], index: 17, kind: output, shape index: {1}]
  %s18 = inlined_call_operand.hbm [shape: f32[8,64], index: 18, kind: output, shape index: {2}]
  %s19 = inlined_call_operand.hbm [shape: f32[8,64], index: 19, kind: output, shape index: {3}]
  %s20 = inlined_call_operand.hbm [shape: f32[8,64], index: 20, kind: output, shape index: {4}]
  %21 = xla_tuple %s16, %s17, %s18, %s19, %s20
  %s22 = sld [smem:[#allocation0]]
  $region106: #{cvae_gm_forward.1} parent=0
    _
  %s24 = ssub.s32 1, %s22
  %s25 = scalar_select 0, %s24, %s22
  $region1: #{cvae_gm_forward.1} parent=0
    #allocation2 [shape = 'u8[4096]{0}', space=vmem, size = 0x1000, scoped, tag = 'output window, operand 0, single buffered']
    #allocation3 [shape = 's32[1]{0}', space=sflag, size = 0x4, scoped, tag = 'scoped memory for cvae_gm_forward.1']
    #allocation4 [shape = 'u8[4096]{0}', space=vmem, size = 0x1000, scoped, tag = 'output window, operand 1, single buffered']
    #allocation5 [shape = 's32[1]{0}', space=sflag, size = 0x4, scoped, tag = 'scoped memory for cvae_gm_forward.1']
    #allocation6 [shape = 'u8[4096]{0}', space=vmem, size = 0x1000, scoped, tag = 'output window, operand 2, single buffered']
    #allocation7 [shape = 'u8[4096]{0}', space=vmem, size = 0x1000, scoped, tag = 'output window, operand 3, single buffered']
    #allocation8 [shape = 's32[1]{0}', space=sflag, size = 0x4, scoped, tag = 'scoped memory for cvae_gm_forward.1']
    #allocation9 [shape = 'u8[4096]{0}', space=vmem, size = 0x1000, scoped, tag = 'output window, operand 4, single buffered']
    %26 = vsyncpa [#allocation3], 0
    %27 = vsyncpa [#allocation5], 0
    %28 = vsyncpa [#allocation8], 0
    // Predicated region
    $region2: #{cvae_gm_forward.1} parent=1 // pred_check
      _
    $region3: #{cvae_gm_forward.1} parent=1 // pred_check_branch
      %30 = sbr.rel (0) target = $region5
    $region4: #{cvae_gm_forward.1} parent=1 // pred_region
      _
    $region5: #{cvae_gm_forward.1} parent=1 // pred_fallthru
      _
    // Predicated region
    $region6: #{cvae_gm_forward.1} parent=1 // pred_check
      _
    $region7: #{cvae_gm_forward.1} parent=1 // pred_check_branch
      %32 = sbr.rel (0) target = $region9
    $region8: #{cvae_gm_forward.1} parent=1 // pred_region
      _
    $region9: #{cvae_gm_forward.1} parent=1 // pred_fallthru
      _
    // Predicated region
    $region10: #{cvae_gm_forward.1} parent=1 // pred_check
      _
    $region11: #{cvae_gm_forward.1} parent=1 // pred_check_branch
      %34 = sbr.rel (0) target = $region13
    $region12: #{cvae_gm_forward.1} parent=1 // pred_region
      _
    $region13: #{cvae_gm_forward.1} parent=1 // pred_fallthru
      _
    // Predicated region
    $region14: #{cvae_gm_forward.1} parent=1 // pred_check
      _
    $region15: #{cvae_gm_forward.1} parent=1 // pred_check_branch
      %36 = sbr.rel (0) target = $region17
    $region16: #{cvae_gm_forward.1} parent=1 // pred_region
      _
    $region17: #{cvae_gm_forward.1} parent=1 // pred_fallthru
      _
    // Predicated region
    $region18: #{cvae_gm_forward.1} parent=1 // pred_check
      _
    $region19: #{cvae_gm_forward.1} parent=1 // pred_check_branch
      %38 = sbr.rel (0) target = $region21
    $region20: #{cvae_gm_forward.1} parent=1 // pred_region
      _
    $region21: #{cvae_gm_forward.1} parent=1 // pred_fallthru
      _
    // Predicated region
    $region22: #{cvae_gm_forward.1} parent=1 // pred_check
      _
    $region23: #{cvae_gm_forward.1} parent=1 // pred_check_branch
      %40 = sbr.rel (0) target = $region25
    $region24: #{cvae_gm_forward.1} parent=1 // pred_region
      _
    $region25: #{cvae_gm_forward.1} parent=1 // pred_fallthru
      _
    // Predicated region
    $region26: #{cvae_gm_forward.1} parent=1 // pred_check
      _
    $region27: #{cvae_gm_forward.1} parent=1 // pred_check_branch
      %42 = sbr.rel (0) target = $region29
    $region28: #{cvae_gm_forward.1} parent=1 // pred_region
      _
    $region29: #{cvae_gm_forward.1} parent=1 // pred_fallthru
      _
    // Predicated region
    $region30: #{cvae_gm_forward.1} parent=1 // pred_check
      _
    $region31: #{cvae_gm_forward.1} parent=1 // pred_check_branch
      %44 = sbr.rel (0) target = $region33
    $region32: #{cvae_gm_forward.1} parent=1 // pred_region
      _
    $region33: #{cvae_gm_forward.1} parent=1 // pred_fallthru
      _
    // Predicated region
    $region34: #{cvae_gm_forward.1} parent=1 // pred_check
      _
    $region35: #{cvae_gm_forward.1} parent=1 // pred_check_branch
      %46 = sbr.rel (0) target = $region37
    $region36: #{cvae_gm_forward.1} parent=1 // pred_region
      _
    $region37: #{cvae_gm_forward.1} parent=1 // pred_fallthru
      _
    // Predicated region
    $region38: #{cvae_gm_forward.1} parent=1 // pred_check
      _
    $region39: #{cvae_gm_forward.1} parent=1 // pred_check_branch
      %48 = sbr.rel (0) target = $region41
    $region40: #{cvae_gm_forward.1} parent=1 // pred_region
      _
    $region41: #{cvae_gm_forward.1} parent=1 // pred_fallthru
      _
    // Predicated region
    $region42: #{cvae_gm_forward.1} parent=1 // pred_check
      _
    $region43: #{cvae_gm_forward.1} parent=1 // pred_check_branch
      %50 = sbr.rel (0) target = $region45
    $region44: #{cvae_gm_forward.1} parent=1 // pred_region
      _
    $region45: #{cvae_gm_forward.1} parent=1 // pred_fallthru
      _
    // Predicated region
    $region46: #{cvae_gm_forward.1} parent=1 // pred_check
      _
    $region47: #{cvae_gm_forward.1} parent=1 // pred_check_branch
      %52 = sbr.rel (0) target = $region49
    $region48: #{cvae_gm_forward.1} parent=1 // pred_region
      _
    $region49: #{cvae_gm_forward.1} parent=1 // pred_fallthru
      _
    // Predicated region
    $region50: #{cvae_gm_forward.1} parent=1 // pred_check
      _
    $region51: #{cvae_gm_forward.1} parent=1 // pred_check_branch
      %54 = sbr.rel (0) target = $region53
    $region52: #{cvae_gm_forward.1} parent=1 // pred_region
      _
    $region53: #{cvae_gm_forward.1} parent=1 // pred_fallthru
      _
    // Predicated region
    $region54: #{cvae_gm_forward.1} parent=1 // pred_check
      _
    $region55: #{cvae_gm_forward.1} parent=1 // pred_check_branch
      %56 = sbr.rel (0) target = $region57
    $region56: #{cvae_gm_forward.1} parent=1 // pred_region
      _
    $region57: #{cvae_gm_forward.1} parent=1 // pred_fallthru
      _
    // Predicated region
    $region58: #{cvae_gm_forward.1} parent=1 // pred_check
      _
    $region59: #{cvae_gm_forward.1} parent=1 // pred_check_branch
      %58 = sbr.rel (0) target = $region61
    $region60: #{cvae_gm_forward.1} parent=1 // pred_region
      _
    $region61: #{cvae_gm_forward.1} parent=1 // pred_fallthru
      _
    // Predicated region
    $region62: #{cvae_gm_forward.1} parent=1 // pred_check
      _
    $region63: #{cvae_gm_forward.1} parent=1 // pred_check_branch
      %60 = sbr.rel (0) target = $region65
    $region64: #{cvae_gm_forward.1} parent=1 // pred_region
      _
    $region65: #{cvae_gm_forward.1} parent=1 // pred_fallthru
      _
    %v61 = vld [vmem:[%s0] sm:$0xff]
    %v62 = vld [vmem:[%s2] sm:$0xff]
    %v63 = vld [vmem:[%s2 + $0x8] sm:$0xff]
    %v64 = vld [vmem:[%s2 + $0x10] sm:$0xff]
    %v65 = vld [vmem:[%s2 + $0x18] sm:$0xff]
    %v66 = vld [vmem:[%s2 + $0x20] sm:$0xff]
    %v67 = vld [vmem:[%s2 + $0x28] sm:$0xff]
    %v68 = vld [vmem:[%s2 + $0x30] sm:$0xff]
    %v69 = vld [vmem:[%s2 + $0x38] sm:$0xff]
    %v70 = vld [vmem:[%s3] sm:$0x3]
    %v72 = vlaneseq
    %v73 = vshrl.u32 %v72, 7
    %v74 = vsub.s32 0, %v73
    %v75 = vrot.slane %v70, %v74
    %v76 = vlaneseq
    %v77 = vshrl.u32 %v76, 7
    %v78 = vsub.s32 1, %v77
    %v79 = vrot.slane %v70, %v78
    %vm82 = vcmask 261120
    %v84 = vsel %vm82, %v61, 0
    %86 = vmatprep.subr.mxu0 %v63
    %87 = vmatpush1.msra.mxu0 %v62
    %88 = vmatprep.subr.mxu0 %v65
    %89 = vmatpush1.msra.mxu0 %v64
    %90 = vmatprep.subr.mxu0 %v67
    %91 = vmatpush1.msra.mxu0 %v66
    %92 = vmatprep.subr.mxu0 %v69
    %93 = vmatpush1.msra.mxu0 %v68
    %94 = vmatprep.subr.mxu0 0.0
    %95 = vmatpush1.msra.mxu0 0.0
    %96 = vmatprep.subr.mxu0 0.0
    %97 = vmatpush1.msra.mxu0 0.0
    %98 = vmatprep.subr.mxu0 0.0
    %99 = vmatpush1.msra.mxu0 0.0
    %100 = vmatprep.subr.mxu0 0.0
    %101 = vmatpush1.msra.mxu0 0.0
    %102 = vmatprep.subr.mxu0 0.0
    %103 = vmatpush1.msra.mxu0 0.0
    %104 = vmatprep.subr.mxu0 0.0
    %105 = vmatpush1.msra.mxu0 0.0
    %106 = vmatprep.subr.mxu0 0.0
    %107 = vmatpush1.msra.mxu0 0.0
    %108 = vmatprep.subr.mxu0 0.0
    %109 = vmatpush1.msra.mxu0 0.0
    %110 = vmatprep.subr.mxu0 0.0
    %111 = vmatpush1.msra.mxu0 0.0
    %112 = vmatprep.subr.mxu0 0.0
    %113 = vmatpush1.msra.mxu0 0.0
    %114 = vmatprep.subr.mxu0 0.0
    %115 = vmatpush1.msra.mxu0 0.0
    %116 = vmatprep.subr.mxu0 0.0
    %117 = vmatpush1.msra.mxu0 0.0
    %118 = vmatprep.subr.mxu0 0.0
    %119 = vmatpush1.msra.mxu0 0.0
    %120 = vmatprep.subr.mxu0 0.0
    %121 = vmatpush1.msra.mxu0 0.0
    %122 = vmatprep.subr.mxu0 0.0
    %123 = vmatpush1.msra.mxu0 0.0
    %124 = vmatprep.subr.mxu0 0.0
    %125 = vmatpush1.msra.mxu0 0.0
    %126 = vmatprep.subr.mxu0 0.0
    %127 = vmatpush1.msra.mxu0 0.0
    %128 = vmatprep.subr.mxu0 0.0
    %129 = vmatpush1.msra.mxu0 0.0
    %130 = vmatprep.subr.mxu0 0.0
    %131 = vmatpush1.msra.mxu0 0.0
    %132 = vmatprep.subr.mxu0 0.0
    %133 = vmatpush1.msra.mxu0 0.0
    %134 = vmatprep.subr.mxu0 0.0
    %135 = vmatpush1.msra.mxu0 0.0
    %136 = vmatprep.subr.mxu0 0.0
    %137 = vmatpush1.msra.mxu0 0.0
    %138 = vmatprep.subr.mxu0 0.0
    %139 = vmatpush1.msra.mxu0 0.0
    %140 = vmatprep.subr.mxu0 0.0
    %141 = vmatpush1.msra.mxu0 0.0
    %142 = vmatprep.subr.mxu0 0.0
    %143 = vmatpush1.msra.mxu0 0.0
    %144 = vmatprep.subr.mxu0 0.0
    %145 = vmatpush1.msra.mxu0 0.0
    %146 = vmatprep.subr.mxu0 0.0
    %147 = vmatpush1.msra.mxu0 0.0
    %148 = vmatprep.subr.mxu0 0.0
    %149 = vmatpush1.msra.mxu0 0.0
    %150 = vmatprep.mubr.f32.mxu0 0.0
    %151 = vmatmul.mubr.f32.gmra.mrb[0].mxu0 %v84
    %v152 = vpop.f32.mrb[0].mxu0
    %v153 = vadd.f32 %v75, %v152
    %v154 = vpop.f32.mrb[0].mxu0
    %v155 = vadd.f32 %v79, %v154
    %156 = vdwg.mxu0
    %v157 = vmax.f32 %v153, 0.0
    %v158 = vmax.f32 %v155, 0.0
    %v159 = vld [vmem:[%s4] sm:$0xff]
    %v160 = vld [vmem:[%s4 + $0x8] sm:$0xff]
    %v161 = vld [vmem:[%s4 + $0x10] sm:$0xff]
    %v162 = vld [vmem:[%s4 + $0x18] sm:$0xff]
    %v163 = vld [vmem:[%s4 + $0x20] sm:$0xff]
    %v164 = vld [vmem:[%s4 + $0x28] sm:$0xff]
    %v165 = vld [vmem:[%s4 + $0x30] sm:$0xff]
    %v166 = vld [vmem:[%s4 + $0x38] sm:$0xff]
    %v167 = vld [vmem:[%s4 + $0x40] sm:$0xff]
    %v168 = vld [vmem:[%s4 + $0x48] sm:$0xff]
    %v169 = vld [vmem:[%s4 + $0x50] sm:$0xff]
    %v170 = vld [vmem:[%s4 + $0x58] sm:$0xff]
    %v171 = vld [vmem:[%s4 + $0x60] sm:$0xff]
    %v172 = vld [vmem:[%s4 + $0x68] sm:$0xff]
    %v173 = vld [vmem:[%s4 + $0x70] sm:$0xff]
    %v174 = vld [vmem:[%s4 + $0x78] sm:$0xff]
    %v175 = vld [vmem:[%s4 + $0x80] sm:$0xff]
    %v176 = vld [vmem:[%s4 + $0x88] sm:$0xff]
    %v177 = vld [vmem:[%s4 + $0x90] sm:$0xff]
    %v178 = vld [vmem:[%s4 + $0x98] sm:$0xff]
    %v179 = vld [vmem:[%s4 + $0xa0] sm:$0xff]
    %v180 = vld [vmem:[%s4 + $0xa8] sm:$0xff]
    %v181 = vld [vmem:[%s4 + $0xb0] sm:$0xff]
    %v182 = vld [vmem:[%s4 + $0xb8] sm:$0xff]
    %v183 = vld [vmem:[%s4 + $0xc0] sm:$0xff]
    %v184 = vld [vmem:[%s4 + $0xc8] sm:$0xff]
    %v185 = vld [vmem:[%s4 + $0xd0] sm:$0xff]
    %v186 = vld [vmem:[%s4 + $0xd8] sm:$0xff]
    %v187 = vld [vmem:[%s4 + $0xe0] sm:$0xff]
    %v188 = vld [vmem:[%s4 + $0xe8] sm:$0xff]
    %v189 = vld [vmem:[%s4 + $0xf0] sm:$0xff]
    %v190 = vld [vmem:[%s4 + $0xf8] sm:$0xff]
    %v191 = vld [vmem:[%s5] sm:$0x1]
    %v193 = vlaneseq
    %v194 = vshrl.u32 %v193, 7
    %v195 = vsub.s32 0, %v194
    %v196 = vrot.slane %v191, %v195
    %198 = vmatprep.subr.mxu0 0.0
    %199 = vmatpush1.msra.mxu0 %v159
    %200 = vmatprep.subr.mxu0 0.0
    %201 = vmatpush1.msra.mxu0 %v160
    %202 = vmatprep.subr.mxu0 0.0
    %203 = vmatpush1.msra.mxu0 %v161
    %204 = vmatprep.subr.mxu0 0.0
    %205 = vmatpush1.msra.mxu0 %v162
    %206 = vmatprep.subr.mxu0 0.0
    %207 = vmatpush1.msra.mxu0 %v163
    %208 = vmatprep.subr.mxu0 0.0
    %209 = vmatpush1.msra.mxu0 %v164
    %210 = vmatprep.subr.mxu0 0.0
    %211 = vmatpush1.msra.mxu0 %v165
    %212 = vmatprep.subr.mxu0 0.0
    %213 = vmatpush1.msra.mxu0 %v166
    %214 = vmatprep.subr.mxu0 0.0
    %215 = vmatpush1.msra.mxu0 %v167
    %216 = vmatprep.subr.mxu0 0.0
    %217 = vmatpush1.msra.mxu0 %v168
    %218 = vmatprep.subr.mxu0 0.0
    %219 = vmatpush1.msra.mxu0 %v169
    %220 = vmatprep.subr.mxu0 0.0
    %221 = vmatpush1.msra.mxu0 %v170
    %222 = vmatprep.subr.mxu0 0.0
    %223 = vmatpush1.msra.mxu0 %v171
    %224 = vmatprep.subr.mxu0 0.0
    %225 = vmatpush1.msra.mxu0 %v172
    %226 = vmatprep.subr.mxu0 0.0
    %227 = vmatpush1.msra.mxu0 %v173
    %228 = vmatprep.subr.mxu0 0.0
    %229 = vmatpush1.msra.mxu0 %v174
    %230 = vmatprep.subr.mxu0 0.0
    %231 = vmatpush1.msra.mxu0 %v175
    %232 = vmatprep.subr.mxu0 0.0
    %233 = vmatpush1.msra.mxu0 %v176
    %234 = vmatprep.subr.mxu0 0.0
    %235 = vmatpush1.msra.mxu0 %v177
    %236 = vmatprep.subr.mxu0 0.0
    %237 = vmatpush1.msra.mxu0 %v178
    %238 = vmatprep.subr.mxu0 0.0
    %239 = vmatpush1.msra.mxu0 %v179
    %240 = vmatprep.subr.mxu0 0.0
    %241 = vmatpush1.msra.mxu0 %v180
    %242 = vmatprep.subr.mxu0 0.0
    %243 = vmatpush1.msra.mxu0 %v181
    %244 = vmatprep.subr.mxu0 0.0
    %245 = vmatpush1.msra.mxu0 %v182
    %246 = vmatprep.subr.mxu0 0.0
    %247 = vmatpush1.msra.mxu0 %v183
    %248 = vmatprep.subr.mxu0 0.0
    %249 = vmatpush1.msra.mxu0 %v184
    %250 = vmatprep.subr.mxu0 0.0
    %251 = vmatpush1.msra.mxu0 %v185
    %252 = vmatprep.subr.mxu0 0.0
    %253 = vmatpush1.msra.mxu0 %v186
    %254 = vmatprep.subr.mxu0 0.0
    %255 = vmatpush1.msra.mxu0 %v187
    %256 = vmatprep.subr.mxu0 0.0
    %257 = vmatpush1.msra.mxu0 %v188
    %258 = vmatprep.subr.mxu0 0.0
    %259 = vmatpush1.msra.mxu0 %v189
    %260 = vmatprep.subr.mxu0 0.0
    %261 = vmatpush1.msra.mxu0 %v190
    %262 = vmatprep.mubr.f32.mxu0 %v158
    %263 = vmatmul.mubr.f32.gmra.mrb[0].mxu0 %v157
    %v264 = vpop.f32.mrb[0].mxu0
    %v265 = vadd.f32 %v196, %v264
    %v266 = vpop.f32.mrb[0].mxu0
    %267 = vdwg.mxu0
    %v268 = vmax.f32 %v265, 0.0
    %v269 = vld [vmem:[%s6] sm:$0xff]
    %v270 = vld [vmem:[%s6 + $0x8] sm:$0xff]
    %v271 = vld [vmem:[%s6 + $0x10] sm:$0xff]
    %v272 = vld [vmem:[%s6 + $0x18] sm:$0xff]
    %v273 = vld [vmem:[%s6 + $0x20] sm:$0xff]
    %v274 = vld [vmem:[%s6 + $0x28] sm:$0xff]
    %v275 = vld [vmem:[%s6 + $0x30] sm:$0xff]
    %v276 = vld [vmem:[%s6 + $0x38] sm:$0xff]
    %v277 = vld [vmem:[%s6 + $0x40] sm:$0xff]
    %v278 = vld [vmem:[%s6 + $0x48] sm:$0xff]
    %v279 = vld [vmem:[%s6 + $0x50] sm:$0xff]
    %v280 = vld [vmem:[%s6 + $0x58] sm:$0xff]
    %v281 = vld [vmem:[%s6 + $0x60] sm:$0xff]
    %v282 = vld [vmem:[%s6 + $0x68] sm:$0xff]
    %v283 = vld [vmem:[%s6 + $0x70] sm:$0xff]
    %v284 = vld [vmem:[%s6 + $0x78] sm:$0xff]
    %v285 = vld [vmem:[%s7] sm:$0x1]
    %v287 = vlaneseq
    %v288 = vshrl.u32 %v287, 7
    %v289 = vsub.s32 0, %v288
    %v290 = vrot.slane %v285, %v289
    %292 = vmatprep.subr.mxu0 0.0
    %293 = vmatpush1.msra.mxu0 %v269
    %294 = vmatprep.subr.mxu0 0.0
    %295 = vmatpush1.msra.mxu0 %v270
    %296 = vmatprep.subr.mxu0 0.0
    %297 = vmatpush1.msra.mxu0 %v271
    %298 = vmatprep.subr.mxu0 0.0
    %299 = vmatpush1.msra.mxu0 %v272
    %300 = vmatprep.subr.mxu0 0.0
    %301 = vmatpush1.msra.mxu0 %v273
    %302 = vmatprep.subr.mxu0 0.0
    %303 = vmatpush1.msra.mxu0 %v274
    %304 = vmatprep.subr.mxu0 0.0
    %305 = vmatpush1.msra.mxu0 %v275
    %306 = vmatprep.subr.mxu0 0.0
    %307 = vmatpush1.msra.mxu0 %v276
    %308 = vmatprep.subr.mxu0 0.0
    %309 = vmatpush1.msra.mxu0 %v277
    %310 = vmatprep.subr.mxu0 0.0
    %311 = vmatpush1.msra.mxu0 %v278
    %312 = vmatprep.subr.mxu0 0.0
    %313 = vmatpush1.msra.mxu0 %v279
    %314 = vmatprep.subr.mxu0 0.0
    %315 = vmatpush1.msra.mxu0 %v280
    %316 = vmatprep.subr.mxu0 0.0
    %317 = vmatpush1.msra.mxu0 %v281
    %318 = vmatprep.subr.mxu0 0.0
    %319 = vmatpush1.msra.mxu0 %v282
    %320 = vmatprep.subr.mxu0 0.0
    %321 = vmatpush1.msra.mxu0 %v283
    %322 = vmatprep.subr.mxu0 0.0
    %323 = vmatpush1.msra.mxu0 %v284
    %324 = vmatprep.subr.mxu0 0.0
    %325 = vmatpush1.msra.mxu0 0.0
    %326 = vmatprep.subr.mxu0 0.0
    %327 = vmatpush1.msra.mxu0 0.0
    %328 = vmatprep.subr.mxu0 0.0
    %329 = vmatpush1.msra.mxu0 0.0
    %330 = vmatprep.subr.mxu0 0.0
    %331 = vmatpush1.msra.mxu0 0.0
    %332 = vmatprep.subr.mxu0 0.0
    %333 = vmatpush1.msra.mxu0 0.0
    %334 = vmatprep.subr.mxu0 0.0
    %335 = vmatpush1.msra.mxu0 0.0
    %336 = vmatprep.subr.mxu0 0.0
    %337 = vmatpush1.msra.mxu0 0.0
    %338 = vmatprep.subr.mxu0 0.0
    %339 = vmatpush1.msra.mxu0 0.0
    %340 = vmatprep.subr.mxu0 0.0
    %341 = vmatpush1.msra.mxu0 0.0
    %342 = vmatprep.subr.mxu0 0.0
    %343 = vmatpush1.msra.mxu0 0.0
    %344 = vmatprep.subr.mxu0 0.0
    %345 = vmatpush1.msra.mxu0 0.0
    %346 = vmatprep.subr.mxu0 0.0
    %347 = vmatpush1.msra.mxu0 0.0
    %348 = vmatprep.subr.mxu0 0.0
    %349 = vmatpush1.msra.mxu0 0.0
    %350 = vmatprep.subr.mxu0 0.0
    %351 = vmatpush1.msra.mxu0 0.0
    %352 = vmatprep.subr.mxu0 0.0
    %353 = vmatpush1.msra.mxu0 0.0
    %354 = vmatprep.subr.mxu0 0.0
    %355 = vmatpush1.msra.mxu0 0.0
    %356 = vmatprep.mubr.f32.mxu0 0.0
    %357 = vmatmul.mubr.f32.gmra.mrb[0].mxu0 %v268
    %v358 = vpop.f32.mrb[0].mxu0
    %v359 = vadd.f32 %v290, %v358
    %v360 = vpop.f32.mrb[0].mxu0
    %361 = vdwg.mxu0
    %v362 = vld [vmem:[%s1] sm:$0xff]
    %v363 = vmul.f32 %v359, 0.5
    %v364 = vmul.f32 %v363, 1.442695
    %v365 = vpow.pop %v364
    %367 = vrot.lane.b32.xlu0 %v365, 64
    %v368 = vpop.permute.xlu0 %367
    %v370 = vmul.f32 %v362, %v368
    %v371 = vadd.f32 %v359, %v370
    %v372 = vld [vmem:[%s8] sm:$0xff]
    %v373 = vld [vmem:[%s8 + $0x8] sm:$0xff]
    %v374 = vld [vmem:[%s8 + $0x10] sm:$0xff]
    %v375 = vld [vmem:[%s8 + $0x18] sm:$0xff]
    %v376 = vld [vmem:[%s8 + $0x20] sm:$0xff]
    %v377 = vld [vmem:[%s8 + $0x28] sm:$0xff]
    %v378 = vld [vmem:[%s8 + $0x30] sm:$0xff]
    %v379 = vld [vmem:[%s8 + $0x38] sm:$0xff]
    %v380 = vld [vmem:[%s8 + $0x40] sm:$0xff]
    %v381 = vld [vmem:[%s8 + $0x48] sm:$0xff]
    %v382 = vld [vmem:[%s8 + $0x50] sm:$0xff]
    %v383 = vld [vmem:[%s8 + $0x58] sm:$0xff]
    %v384 = vld [vmem:[%s8 + $0x60] sm:$0xff]
    %v385 = vld [vmem:[%s8 + $0x68] sm:$0xff]
    %v386 = vld [vmem:[%s8 + $0x70] sm:$0xff]
    %v387 = vld [vmem:[%s8 + $0x78] sm:$0xff]
    %v388 = vld [vmem:[%s9] sm:$0x3]
    %v390 = vlaneseq
    %v391 = vshrl.u32 %v390, 7
    %v392 = vsub.s32 0, %v391
    %v393 = vrot.slane %v388, %v392
    %v394 = vlaneseq
    %v395 = vshrl.u32 %v394, 7
    %v396 = vsub.s32 1, %v395
    %v397 = vrot.slane %v388, %v396
    %vm400 = vcmask 523264
    %v402 = vsel %vm400, %v371, 0
    %404 = vmatprep.subr.mxu0 %v373
    %405 = vmatpush1.msra.mxu0 %v372
    %406 = vmatprep.subr.mxu0 %v375
    %407 = vmatpush1.msra.mxu0 %v374
    %408 = vmatprep.subr.mxu0 %v377
    %409 = vmatpush1.msra.mxu0 %v376
    %410 = vmatprep.subr.mxu0 %v379
    %411 = vmatpush1.msra.mxu0 %v378
    %412 = vmatprep.subr.mxu0 %v381
    %413 = vmatpush1.msra.mxu0 %v380
    %414 = vmatprep.subr.mxu0 %v383
    %415 = vmatpush1.msra.mxu0 %v382
    %416 = vmatprep.subr.mxu0 %v385
    %417 = vmatpush1.msra.mxu0 %v384
    %418 = vmatprep.subr.mxu0 %v387
    %419 = vmatpush1.msra.mxu0 %v386
    %420 = vmatprep.subr.mxu0 0.0
    %421 = vmatpush1.msra.mxu0 0.0
    %422 = vmatprep.subr.mxu0 0.0
    %423 = vmatpush1.msra.mxu0 0.0
    %424 = vmatprep.subr.mxu0 0.0
    %425 = vmatpush1.msra.mxu0 0.0
    %426 = vmatprep.subr.mxu0 0.0
    %427 = vmatpush1.msra.mxu0 0.0
    %428 = vmatprep.subr.mxu0 0.0
    %429 = vmatpush1.msra.mxu0 0.0
    %430 = vmatprep.subr.mxu0 0.0
    %431 = vmatpush1.msra.mxu0 0.0
    %432 = vmatprep.subr.mxu0 0.0
    %433 = vmatpush1.msra.mxu0 0.0
    %434 = vmatprep.subr.mxu0 0.0
    %435 = vmatpush1.msra.mxu0 0.0
    %436 = vmatprep.subr.mxu0 0.0
    %437 = vmatpush1.msra.mxu0 0.0
    %438 = vmatprep.subr.mxu0 0.0
    %439 = vmatpush1.msra.mxu0 0.0
    %440 = vmatprep.subr.mxu0 0.0
    %441 = vmatpush1.msra.mxu0 0.0
    %442 = vmatprep.subr.mxu0 0.0
    %443 = vmatpush1.msra.mxu0 0.0
    %444 = vmatprep.subr.mxu0 0.0
    %445 = vmatpush1.msra.mxu0 0.0
    %446 = vmatprep.subr.mxu0 0.0
    %447 = vmatpush1.msra.mxu0 0.0
    %448 = vmatprep.subr.mxu0 0.0
    %449 = vmatpush1.msra.mxu0 0.0
    %450 = vmatprep.subr.mxu0 0.0
    %451 = vmatpush1.msra.mxu0 0.0
    %452 = vmatprep.subr.mxu0 0.0
    %453 = vmatpush1.msra.mxu0 0.0
    %454 = vmatprep.subr.mxu0 0.0
    %455 = vmatpush1.msra.mxu0 0.0
    %456 = vmatprep.subr.mxu0 0.0
    %457 = vmatpush1.msra.mxu0 0.0
    %458 = vmatprep.subr.mxu0 0.0
    %459 = vmatpush1.msra.mxu0 0.0
    %460 = vmatprep.subr.mxu0 0.0
    %461 = vmatpush1.msra.mxu0 0.0
    %462 = vmatprep.subr.mxu0 0.0
    %463 = vmatpush1.msra.mxu0 0.0
    %464 = vmatprep.subr.mxu0 0.0
    %465 = vmatpush1.msra.mxu0 0.0
    %466 = vmatprep.subr.mxu0 0.0
    %467 = vmatpush1.msra.mxu0 0.0
    %468 = vmatprep.mubr.f32.mxu0 0.0
    %469 = vmatmul.mubr.f32.gmra.mrb[0].mxu0 %v402
    %v470 = vpop.f32.mrb[0].mxu0
    %v471 = vadd.f32 %v393, %v470
    %v472 = vpop.f32.mrb[0].mxu0
    %v473 = vadd.f32 %v397, %v472
    %474 = vdwg.mxu0
    %v475 = vmax.f32 %v471, 0.0
    %v476 = vmax.f32 %v473, 0.0
    %v477 = vld [vmem:[%s10] sm:$0xff]
    %v478 = vld [vmem:[%s10 + $0x8] sm:$0xff]
    %v479 = vld [vmem:[%s10 + $0x10] sm:$0xff]
    %v480 = vld [vmem:[%s10 + $0x18] sm:$0xff]
    %v481 = vld [vmem:[%s10 + $0x20] sm:$0xff]
    %v482 = vld [vmem:[%s10 + $0x28] sm:$0xff]
    %v483 = vld [vmem:[%s10 + $0x30] sm:$0xff]
    %v484 = vld [vmem:[%s10 + $0x38] sm:$0xff]
    %v485 = vld [vmem:[%s10 + $0x40] sm:$0xff]
    %v486 = vld [vmem:[%s10 + $0x48] sm:$0xff]
    %v487 = vld [vmem:[%s10 + $0x50] sm:$0xff]
    %v488 = vld [vmem:[%s10 + $0x58] sm:$0xff]
    %v489 = vld [vmem:[%s10 + $0x60] sm:$0xff]
    %v490 = vld [vmem:[%s10 + $0x68] sm:$0xff]
    %v491 = vld [vmem:[%s10 + $0x70] sm:$0xff]
    %v492 = vld [vmem:[%s10 + $0x78] sm:$0xff]
    %v493 = vld [vmem:[%s10 + $0x80] sm:$0xff]
    %v494 = vld [vmem:[%s10 + $0x88] sm:$0xff]
    %v495 = vld [vmem:[%s10 + $0x90] sm:$0xff]
    %v496 = vld [vmem:[%s10 + $0x98] sm:$0xff]
    %v497 = vld [vmem:[%s10 + $0xa0] sm:$0xff]
    %v498 = vld [vmem:[%s10 + $0xa8] sm:$0xff]
    %v499 = vld [vmem:[%s10 + $0xb0] sm:$0xff]
    %v500 = vld [vmem:[%s10 + $0xb8] sm:$0xff]
    %v501 = vld [vmem:[%s10 + $0xc0] sm:$0xff]
    %v502 = vld [vmem:[%s10 + $0xc8] sm:$0xff]
    %v503 = vld [vmem:[%s10 + $0xd0] sm:$0xff]
    %v504 = vld [vmem:[%s10 + $0xd8] sm:$0xff]
    %v505 = vld [vmem:[%s10 + $0xe0] sm:$0xff]
    %v506 = vld [vmem:[%s10 + $0xe8] sm:$0xff]
    %v507 = vld [vmem:[%s10 + $0xf0] sm:$0xff]
    %v508 = vld [vmem:[%s10 + $0xf8] sm:$0xff]
    %v509 = vld [vmem:[%s11] sm:$0x3]
    %v511 = vlaneseq
    %v512 = vshrl.u32 %v511, 7
    %v513 = vsub.s32 0, %v512
    %v514 = vrot.slane %v509, %v513
    %v515 = vlaneseq
    %v516 = vshrl.u32 %v515, 7
    %v517 = vsub.s32 1, %v516
    %v518 = vrot.slane %v509, %v517
    %521 = vmatprep.subr.mxu0 %v478
    %522 = vmatpush1.msra.mxu0 %v477
    %523 = vmatprep.subr.mxu0 %v480
    %524 = vmatpush1.msra.mxu0 %v479
    %525 = vmatprep.subr.mxu0 %v482
    %526 = vmatpush1.msra.mxu0 %v481
    %527 = vmatprep.subr.mxu0 %v484
    %528 = vmatpush1.msra.mxu0 %v483
    %529 = vmatprep.subr.mxu0 %v486
    %530 = vmatpush1.msra.mxu0 %v485
    %531 = vmatprep.subr.mxu0 %v488
    %532 = vmatpush1.msra.mxu0 %v487
    %533 = vmatprep.subr.mxu0 %v490
    %534 = vmatpush1.msra.mxu0 %v489
    %535 = vmatprep.subr.mxu0 %v492
    %536 = vmatpush1.msra.mxu0 %v491
    %537 = vmatprep.subr.mxu0 %v494
    %538 = vmatpush1.msra.mxu0 %v493
    %539 = vmatprep.subr.mxu0 %v496
    %540 = vmatpush1.msra.mxu0 %v495
    %541 = vmatprep.subr.mxu0 %v498
    %542 = vmatpush1.msra.mxu0 %v497
    %543 = vmatprep.subr.mxu0 %v500
    %544 = vmatpush1.msra.mxu0 %v499
    %545 = vmatprep.subr.mxu0 %v502
    %546 = vmatpush1.msra.mxu0 %v501
    %547 = vmatprep.subr.mxu0 %v504
    %548 = vmatpush1.msra.mxu0 %v503
    %549 = vmatprep.subr.mxu0 %v506
    %550 = vmatpush1.msra.mxu0 %v505
    %551 = vmatprep.subr.mxu0 %v508
    %552 = vmatpush1.msra.mxu0 %v507
    %553 = vmatprep.subr.mxu0 0.0
    %554 = vmatpush1.msra.mxu0 0.0
    %555 = vmatprep.subr.mxu0 0.0
    %556 = vmatpush1.msra.mxu0 0.0
    %557 = vmatprep.subr.mxu0 0.0
    %558 = vmatpush1.msra.mxu0 0.0
    %559 = vmatprep.subr.mxu0 0.0
    %560 = vmatpush1.msra.mxu0 0.0
    %561 = vmatprep.subr.mxu0 0.0
    %562 = vmatpush1.msra.mxu0 0.0
    %563 = vmatprep.subr.mxu0 0.0
    %564 = vmatpush1.msra.mxu0 0.0
    %565 = vmatprep.subr.mxu0 0.0
    %566 = vmatpush1.msra.mxu0 0.0
    %567 = vmatprep.subr.mxu0 0.0
    %568 = vmatpush1.msra.mxu0 0.0
    %569 = vmatprep.subr.mxu0 0.0
    %570 = vmatpush1.msra.mxu0 0.0
    %571 = vmatprep.subr.mxu0 0.0
    %572 = vmatpush1.msra.mxu0 0.0
    %573 = vmatprep.subr.mxu0 0.0
    %574 = vmatpush1.msra.mxu0 0.0
    %575 = vmatprep.subr.mxu0 0.0
    %576 = vmatpush1.msra.mxu0 0.0
    %577 = vmatprep.subr.mxu0 0.0
    %578 = vmatpush1.msra.mxu0 0.0
    %579 = vmatprep.subr.mxu0 0.0
    %580 = vmatpush1.msra.mxu0 0.0
    %581 = vmatprep.subr.mxu0 0.0
    %582 = vmatpush1.msra.mxu0 0.0
    %583 = vmatprep.subr.mxu0 0.0
    %584 = vmatpush1.msra.mxu0 0.0
    %585 = vmatprep.mubr.f32.mxu0 0.0
    %586 = vmatmul.mubr.f32.gmra.mrb[0].mxu0 %v475
    %v587 = vpop.f32.mrb[0].mxu0
    %v588 = vadd.f32 %v514, %v587
    %v589 = vpop.f32.mrb[0].mxu0
    %v590 = vadd.f32 %v518, %v589
    %591 = vdwg.mxu0
    %v592 = vmax.f32 %v588, 0.0
    %v593 = vmax.f32 %v590, 0.0
    %v594 = vld [vmem:[%s12] sm:$0xff]
    %v595 = vld [vmem:[%s12 + $0x8] sm:$0xff]
    %v596 = vld [vmem:[%s12 + $0x10] sm:$0xff]
    %v597 = vld [vmem:[%s12 + $0x18] sm:$0xff]
    %v598 = vld [vmem:[%s12 + $0x20] sm:$0xff]
    %v599 = vld [vmem:[%s12 + $0x28] sm:$0xff]
    %v600 = vld [vmem:[%s12 + $0x30] sm:$0xff]
    %v601 = vld [vmem:[%s12 + $0x38] sm:$0xff]
    %v602 = vld [vmem:[%s12 + $0x40] sm:$0xff]
    %v603 = vld [vmem:[%s12 + $0x48] sm:$0xff]
    %v604 = vld [vmem:[%s12 + $0x50] sm:$0xff]
    %v605 = vld [vmem:[%s12 + $0x58] sm:$0xff]
    %v606 = vld [vmem:[%s12 + $0x60] sm:$0xff]
    %v607 = vld [vmem:[%s12 + $0x68] sm:$0xff]
    %v608 = vld [vmem:[%s12 + $0x70] sm:$0xff]
    %v609 = vld [vmem:[%s12 + $0x78] sm:$0xff]
    %v610 = vld [vmem:[%s12 + $0x80] sm:$0xff]
    %v611 = vld [vmem:[%s12 + $0x88] sm:$0xff]
    %v612 = vld [vmem:[%s12 + $0x90] sm:$0xff]
    %v613 = vld [vmem:[%s12 + $0x98] sm:$0xff]
    %v614 = vld [vmem:[%s12 + $0xa0] sm:$0xff]
    %v615 = vld [vmem:[%s12 + $0xa8] sm:$0xff]
    %v616 = vld [vmem:[%s12 + $0xb0] sm:$0xff]
    %v617 = vld [vmem:[%s12 + $0xb8] sm:$0xff]
    %v618 = vld [vmem:[%s12 + $0xc0] sm:$0xff]
    %v619 = vld [vmem:[%s12 + $0xc8] sm:$0xff]
    %v620 = vld [vmem:[%s12 + $0xd0] sm:$0xff]
    %v621 = vld [vmem:[%s12 + $0xd8] sm:$0xff]
    %v622 = vld [vmem:[%s12 + $0xe0] sm:$0xff]
    %v623 = vld [vmem:[%s12 + $0xe8] sm:$0xff]
    %v624 = vld [vmem:[%s12 + $0xf0] sm:$0xff]
    %v625 = vld [vmem:[%s12 + $0xf8] sm:$0xff]
    %v626 = vld [vmem:[%s13] sm:$0x1]
    %v628 = vlaneseq
    %v629 = vshrl.u32 %v628, 7
    %v630 = vsub.s32 0, %v629
    %v631 = vrot.slane %v626, %v630
    %633 = vmatprep.subr.mxu0 0.0
    %634 = vmatpush1.msra.mxu0 %v594
    %635 = vmatprep.subr.mxu0 0.0
    %636 = vmatpush1.msra.mxu0 %v595
    %637 = vmatprep.subr.mxu0 0.0
    %638 = vmatpush1.msra.mxu0 %v596
    %639 = vmatprep.subr.mxu0 0.0
    %640 = vmatpush1.msra.mxu0 %v597
    %641 = vmatprep.subr.mxu0 0.0
    %642 = vmatpush1.msra.mxu0 %v598
    %643 = vmatprep.subr.mxu0 0.0
    %644 = vmatpush1.msra.mxu0 %v599
    %645 = vmatprep.subr.mxu0 0.0
    %646 = vmatpush1.msra.mxu0 %v600
    %647 = vmatprep.subr.mxu0 0.0
    %648 = vmatpush1.msra.mxu0 %v601
    %649 = vmatprep.subr.mxu0 0.0
    %650 = vmatpush1.msra.mxu0 %v602
    %651 = vmatprep.subr.mxu0 0.0
    %652 = vmatpush1.msra.mxu0 %v603
    %653 = vmatprep.subr.mxu0 0.0
    %654 = vmatpush1.msra.mxu0 %v604
    %655 = vmatprep.subr.mxu0 0.0
    %656 = vmatpush1.msra.mxu0 %v605
    %657 = vmatprep.subr.mxu0 0.0
    %658 = vmatpush1.msra.mxu0 %v606
    %659 = vmatprep.subr.mxu0 0.0
    %660 = vmatpush1.msra.mxu0 %v607
    %661 = vmatprep.subr.mxu0 0.0
    %662 = vmatpush1.msra.mxu0 %v608
    %663 = vmatprep.subr.mxu0 0.0
    %664 = vmatpush1.msra.mxu0 %v609
    %665 = vmatprep.subr.mxu0 0.0
    %666 = vmatpush1.msra.mxu0 %v610
    %667 = vmatprep.subr.mxu0 0.0
    %668 = vmatpush1.msra.mxu0 %v611
    %669 = vmatprep.subr.mxu0 0.0
    %670 = vmatpush1.msra.mxu0 %v612
    %671 = vmatprep.subr.mxu0 0.0
    %672 = vmatpush1.msra.mxu0 %v613
    %673 = vmatprep.subr.mxu0 0.0
    %674 = vmatpush1.msra.mxu0 %v614
    %675 = vmatprep.subr.mxu0 0.0
    %676 = vmatpush1.msra.mxu0 %v615
    %677 = vmatprep.subr.mxu0 0.0
    %678 = vmatpush1.msra.mxu0 %v616
    %679 = vmatprep.subr.mxu0 0.0
    %680 = vmatpush1.msra.mxu0 %v617
    %681 = vmatprep.subr.mxu0 0.0
    %682 = vmatpush1.msra.mxu0 %v618
    %683 = vmatprep.subr.mxu0 0.0
    %684 = vmatpush1.msra.mxu0 %v619
    %685 = vmatprep.subr.mxu0 0.0
    %686 = vmatpush1.msra.mxu0 %v620
    %687 = vmatprep.subr.mxu0 0.0
    %688 = vmatpush1.msra.mxu0 %v621
    %689 = vmatprep.subr.mxu0 0.0
    %690 = vmatpush1.msra.mxu0 %v622
    %691 = vmatprep.subr.mxu0 0.0
    %692 = vmatpush1.msra.mxu0 %v623
    %693 = vmatprep.subr.mxu0 0.0
    %694 = vmatpush1.msra.mxu0 %v624
    %695 = vmatprep.subr.mxu0 0.0
    %696 = vmatpush1.msra.mxu0 %v625
    %697 = vmatprep.mubr.f32.mxu0 %v593
    %698 = vmatmul.mubr.f32.gmra.mrb[0].mxu0 %v592
    %v699 = vpop.f32.mrb[0].mxu0
    %v700 = vadd.f32 %v631, %v699
    %v701 = vpop.f32.mrb[0].mxu0
    %702 = vdwg.mxu0
    %v703 = vld [vmem:[%s14] sm:$0xff]
    %v704 = vld [vmem:[%s14 + $0x8] sm:$0xff]
    %v705 = vld [vmem:[%s14 + $0x10] sm:$0xff]
    %v706 = vld [vmem:[%s14 + $0x18] sm:$0xff]
    %v707 = vld [vmem:[%s14 + $0x20] sm:$0xff]
    %v708 = vld [vmem:[%s14 + $0x28] sm:$0xff]
    %v709 = vld [vmem:[%s14 + $0x30] sm:$0xff]
    %v710 = vld [vmem:[%s14 + $0x38] sm:$0xff]
    %v711 = vld [vmem:[%s14 + $0x40] sm:$0xff]
    %v712 = vld [vmem:[%s14 + $0x48] sm:$0xff]
    %v713 = vld [vmem:[%s14 + $0x50] sm:$0xff]
    %v714 = vld [vmem:[%s14 + $0x58] sm:$0xff]
    %v715 = vld [vmem:[%s14 + $0x60] sm:$0xff]
    %v716 = vld [vmem:[%s14 + $0x68] sm:$0xff]
    %v717 = vld [vmem:[%s14 + $0x70] sm:$0xff]
    %v718 = vld [vmem:[%s14 + $0x78] sm:$0xff]
    %v719 = vld [vmem:[%s15] sm:$0x1]
    %v721 = vlaneseq
    %v722 = vshrl.u32 %v721, 7
    %v723 = vsub.s32 0, %v722
    %v724 = vrot.slane %v719, %v723
    %726 = vmatprep.subr.mxu0 0.0
    %727 = vmatpush1.msra.mxu0 %v703
    %728 = vmatprep.subr.mxu0 0.0
    %729 = vmatpush1.msra.mxu0 %v704
    %730 = vmatprep.subr.mxu0 0.0
    %731 = vmatpush1.msra.mxu0 %v705
    %732 = vmatprep.subr.mxu0 0.0
    %733 = vmatpush1.msra.mxu0 %v706
    %734 = vmatprep.subr.mxu0 0.0
    %735 = vmatpush1.msra.mxu0 %v707
    %736 = vmatprep.subr.mxu0 0.0
    %737 = vmatpush1.msra.mxu0 %v708
    %738 = vmatprep.subr.mxu0 0.0
    %739 = vmatpush1.msra.mxu0 %v709
    %740 = vmatprep.subr.mxu0 0.0
    %741 = vmatpush1.msra.mxu0 %v710
    %742 = vmatprep.subr.mxu0 0.0
    %743 = vmatpush1.msra.mxu0 %v711
    %744 = vmatprep.subr.mxu0 0.0
    %745 = vmatpush1.msra.mxu0 %v712
    %746 = vmatprep.subr.mxu0 0.0
    %747 = vmatpush1.msra.mxu0 %v713
    %748 = vmatprep.subr.mxu0 0.0
    %749 = vmatpush1.msra.mxu0 %v714
    %750 = vmatprep.subr.mxu0 0.0
    %751 = vmatpush1.msra.mxu0 %v715
    %752 = vmatprep.subr.mxu0 0.0
    %753 = vmatpush1.msra.mxu0 %v716
    %754 = vmatprep.subr.mxu0 0.0
    %755 = vmatpush1.msra.mxu0 %v717
    %756 = vmatprep.subr.mxu0 0.0
    %757 = vmatpush1.msra.mxu0 %v718
    %758 = vmatprep.subr.mxu0 0.0
    %759 = vmatpush1.msra.mxu0 0.0
    %760 = vmatprep.subr.mxu0 0.0
    %761 = vmatpush1.msra.mxu0 0.0
    %762 = vmatprep.subr.mxu0 0.0
    %763 = vmatpush1.msra.mxu0 0.0
    %764 = vmatprep.subr.mxu0 0.0
    %765 = vmatpush1.msra.mxu0 0.0
    %766 = vmatprep.subr.mxu0 0.0
    %767 = vmatpush1.msra.mxu0 0.0
    %768 = vmatprep.subr.mxu0 0.0
    %769 = vmatpush1.msra.mxu0 0.0
    %770 = vmatprep.subr.mxu0 0.0
    %771 = vmatpush1.msra.mxu0 0.0
    %772 = vmatprep.subr.mxu0 0.0
    %773 = vmatpush1.msra.mxu0 0.0
    %774 = vmatprep.subr.mxu0 0.0
    %775 = vmatpush1.msra.mxu0 0.0
    %776 = vmatprep.subr.mxu0 0.0
    %777 = vmatpush1.msra.mxu0 0.0
    %778 = vmatprep.subr.mxu0 0.0
    %779 = vmatpush1.msra.mxu0 0.0
    %780 = vmatprep.subr.mxu0 0.0
    %781 = vmatpush1.msra.mxu0 0.0
    %782 = vmatprep.subr.mxu0 0.0
    %783 = vmatpush1.msra.mxu0 0.0
    %784 = vmatprep.subr.mxu0 0.0
    %785 = vmatpush1.msra.mxu0 0.0
    %786 = vmatprep.subr.mxu0 0.0
    %787 = vmatpush1.msra.mxu0 0.0
    %788 = vmatprep.subr.mxu0 0.0
    %789 = vmatpush1.msra.mxu0 0.0
    %790 = vmatprep.mubr.f32.mxu0 0.0
    %791 = vmatmul.mubr.f32.gmra.mrb[0].mxu0 %v476
    %v792 = vpop.f32.mrb[0].mxu0
    %v793 = vadd.f32 %v724, %v792
    %v794 = vpop.f32.mrb[0].mxu0
    %795 = vdwg.mxu0
    %v796 = vmul.f32 %v793, %v793
    %v797 = vsel %vm400, %v796, 0.0
    %798 = vadd.xlane.f32.xlu0 %v797
    %v799 = vpop.xlane.xlu0 %798
    %v800 = vmax.f32 %v799, 1e-24
    %v801 = vrsqrt.pop %v800
    %v802 = vmul.f32 %v793, %v801
    %803 = vst.msk [vmem:[#allocation2] sm:$0xff] %vm82, %v700
    %804 = vst.msk [vmem:[#allocation4] sm:$0xff] %vm400, %v359
    %806 = vrot.lane.b32.xlu0 %v359, 64
    %v807 = vpop.permute.xlu0 %806
    %809 = vst.msk [vmem:[#allocation6] sm:$0xff] %vm400, %v807
    %810 = vst.msk [vmem:[#allocation7] sm:$0xff] %vm400, %v371
    %811 = vst.msk [vmem:[#allocation9] sm:$0xff] %vm400, %v802
    // Predicated region
    $region66: #{cvae_gm_forward.1} parent=1 // pred_check
      _
    $region67: #{cvae_gm_forward.1} parent=1 // pred_check_branch
      %813 = sbr.rel (0) target = $region69
    $region68: #{cvae_gm_forward.1} parent=1 // pred_region
      %s815 = ssub.s32 128, 128
      %816 = vsyncadd [#allocation3], %s815
      %s818 = sshll.u32 [#allocation2], 4
      %s819 = int_to_ptr.vmem [resolvable:$true] %s818
      %821 = dma.vmem_to_hbm [thread:$0]  %s819, 128, %s16, [#allocation3]
    $region69: #{cvae_gm_forward.1} parent=1 // pred_fallthru
      _
    // Predicated region
    $region70: #{cvae_gm_forward.1} parent=1 // pred_check
      _
    $region71: #{cvae_gm_forward.1} parent=1 // pred_check_branch
      %823 = sbr.rel (0) target = $region73
    $region72: #{cvae_gm_forward.1} parent=1 // pred_region
      %s825 = ssub.s32 128, 128
      %826 = vsyncadd [#allocation5], %s825
      %s828 = sshll.u32 [#allocation4], 4
      %s829 = int_to_ptr.vmem [resolvable:$true] %s828
      %831 = dma.vmem_to_hbm [thread:$0]  %s829, 128, %s17, [#allocation5]
    $region73: #{cvae_gm_forward.1} parent=1 // pred_fallthru
      _
    // Predicated region
    $region74: #{cvae_gm_forward.1} parent=1 // pred_check
      _
    $region75: #{cvae_gm_forward.1} parent=1 // pred_check_branch
      %833 = sbr.rel (0) target = $region77
    $region76: #{cvae_gm_forward.1} parent=1 // pred_region
      %s835 = ssub.s32 128, 128
      %836 = vsyncadd [#allocation5], %s835
      %s838 = sshll.u32 [#allocation6], 4
      %s839 = int_to_ptr.vmem [resolvable:$true] %s838
      %841 = dma.vmem_to_hbm [thread:$0]  %s839, 128, %s18, [#allocation5]
    $region77: #{cvae_gm_forward.1} parent=1 // pred_fallthru
      _
    // Predicated region
    $region78: #{cvae_gm_forward.1} parent=1 // pred_check
      _
    $region79: #{cvae_gm_forward.1} parent=1 // pred_check_branch
      %843 = sbr.rel (0) target = $region81
    $region80: #{cvae_gm_forward.1} parent=1 // pred_region
      %s845 = ssub.s32 128, 128
      %846 = vsyncadd [#allocation8], %s845
      %s848 = sshll.u32 [#allocation7], 4
      %s849 = int_to_ptr.vmem [resolvable:$true] %s848
      %851 = dma.vmem_to_hbm [thread:$0]  %s849, 128, %s19, [#allocation8]
    $region81: #{cvae_gm_forward.1} parent=1 // pred_fallthru
      _
    // Predicated region
    $region82: #{cvae_gm_forward.1} parent=1 // pred_check
      _
    $region83: #{cvae_gm_forward.1} parent=1 // pred_check_branch
      %853 = sbr.rel (0) target = $region85
    $region84: #{cvae_gm_forward.1} parent=1 // pred_region
      %s855 = ssub.s32 128, 128
      %856 = vsyncadd [#allocation8], %s855
      %s858 = sshll.u32 [#allocation9], 4
      %s859 = int_to_ptr.vmem [resolvable:$true] %s858
      %861 = dma.vmem_to_hbm [thread:$0]  %s859, 128, %s20, [#allocation8]
    $region85: #{cvae_gm_forward.1} parent=1 // pred_fallthru
      _
    // Predicated region
    $region86: #{cvae_gm_forward.1} parent=1 // pred_check
      _
    $region87: #{cvae_gm_forward.1} parent=1 // pred_check_branch
      %863 = sbr.rel (0) target = $region89
    $region88: #{cvae_gm_forward.1} parent=1 // pred_region
      %864 = dma.done [#allocation3], 128
    $region89: #{cvae_gm_forward.1} parent=1 // pred_fallthru
      _
    // Predicated region
    $region90: #{cvae_gm_forward.1} parent=1 // pred_check
      _
    $region91: #{cvae_gm_forward.1} parent=1 // pred_check_branch
      %866 = sbr.rel (0) target = $region93
    $region92: #{cvae_gm_forward.1} parent=1 // pred_region
      %867 = dma.done [#allocation5], 128
    $region93: #{cvae_gm_forward.1} parent=1 // pred_fallthru
      _
    // Predicated region
    $region94: #{cvae_gm_forward.1} parent=1 // pred_check
      _
    $region95: #{cvae_gm_forward.1} parent=1 // pred_check_branch
      %869 = sbr.rel (0) target = $region97
    $region96: #{cvae_gm_forward.1} parent=1 // pred_region
      %870 = dma.done [#allocation5], 128
    $region97: #{cvae_gm_forward.1} parent=1 // pred_fallthru
      _
    // Predicated region
    $region98: #{cvae_gm_forward.1} parent=1 // pred_check
      _
    $region99: #{cvae_gm_forward.1} parent=1 // pred_check_branch
      %872 = sbr.rel (0) target = $region101
    $region100: #{cvae_gm_forward.1} parent=1 // pred_region
      %873 = dma.done [#allocation8], 128
    $region101: #{cvae_gm_forward.1} parent=1 // pred_fallthru
      _
    // Predicated region
    $region102: #{cvae_gm_forward.1} parent=1 // pred_check
      _
    $region103: #{cvae_gm_forward.1} parent=1 // pred_check_branch
      %875 = sbr.rel (0) target = $region105
    $region104: #{cvae_gm_forward.1} parent=1 // pred_region
      %876 = dma.done [#allocation8], 128
    $region105: #{cvae_gm_forward.1} parent=1 // pred_fallthru
      _
    %877 = vsyncpa [#allocation3], 1
    %878 = vsyncpa [#allocation5], 1
    %879 = vsyncpa [#allocation8], 1

</llo_original>
